<compile_context>
chip_gen: v7x
topology: tpu7x:2x2x1
jax: 0.10.0
libtpu: 0.0.40
codegen_flags: <defaults>
</compile_context>

<pallas_src>
import jax
import jax.numpy as jnp
from jax import lax
from jax.experimental import pallas as pl
from jax.experimental.pallas import tpu as pltpu


def _round_up(x, m):
    return ((x + m - 1) // m) * m


def _vmem_staging_budget_bytes():
    """Max table size we are willing to stage whole in VMEM (generation-aware)."""
    try:
        info = pltpu.get_tpu_info()
        # At most a quarter of physical VMEM for the table (16 MiB on v7x,
        # 32 MiB on v5e/v6e), leaving room for double-buffered output tiles.
        return min(int(info.vmem_capacity_bytes) // 4, 32 * 1024 * 1024)
    except Exception:
        return 12 * 1024 * 1024  # conservative default, safe on every generation


def _staged_table_gather_kernel(idx_ref, table_ref, out_ref):
    # idx_ref:   (padded_bs,) int32 scalar-prefetch ref in SMEM.
    # table_ref: (num_actions, latent_dim) VMEM tile = full table, staged once
    #            and kept resident (constant index_map).
    # out_ref:   (TILE_B, latent_dim) VMEM output tile for this grid step.
    tile_b = out_ref.shape[0]
    base = pl.program_id(0) * tile_b

    def body(r, carry):
        row = idx_ref[base + r]            # cheap SMEM scalar read
        out_ref[r, :] = table_ref[row, :]  # dynamic sublane slice of staged table
        return carry

    lax.fori_loop(0, tile_b, body, 0, unroll=bool(tile_b <= 32))


def _row_dma_gather_kernel(idx_ref, row_ref, out_ref):
    # Fallback path: idx_ref was already consumed by the index_map to pick the
    # embedding row; the body is a pure copy of the gathered row.
    del idx_ref
    out_ref[...] = row_ref[...]


def _embed_action_impl(inp, action_embedding):
    """Pallas equivalent of EmbedAction.forward.

    inp:               (bs, k) float array; column 0 carries the action index.
    action_embedding:  (num_actions, latent_dim) float32 parameter.
    returns:           (bs, latent_dim) float32.
    """
    bs = inp.shape[0]
    num_actions, latent_dim = action_embedding.shape
    elem_bytes = action_embedding.dtype.itemsize
    table_bytes = num_actions * latent_dim * elem_bytes

    # input[:, 0].to(torch.long) equivalent; clamp so malformed ids cannot drive
    # an out-of-bounds row access (documented divergence: PyTorch would raise).
    idx = jnp.clip(inp[:, 0].astype(jnp.int32), 0, num_actions - 1)  # (bs,)

    if table_bytes <= _vmem_staging_budget_bytes():
        # ---------------- Small-table fast path ----------------
        tile_b = min(128, _round_up(bs, 8))          # sublane-aligned output tiles
        padded_bs = _round_up(bs, tile_b)
        idx_padded = jnp.pad(idx, (0, padded_bs - bs))   # pad rows read table[0]

        out_bytes = padded_bs * latent_dim * elem_bytes
        grid_spec = pltpu.PrefetchScalarGridSpec(
            num_scalar_prefetch=1,                   # idx lands in SMEM
            grid=(padded_bs // tile_b,),
            in_specs=[
                # Full-table block; constant block index -> staged once, resident.
                pl.BlockSpec((num_actions, latent_dim), lambda i, idx_ref: (0, 0)),
            ],
            out_specs=pl.BlockSpec((tile_b, latent_dim),
                                   lambda i, idx_ref: (i, 0)),
        )
        vmem_limit = max(
            16 * 1024 * 1024,
            table_bytes + 4 * tile_b * latent_dim * elem_bytes + (2 << 20),
        )
        out = pl.pallas_call(
            _staged_table_gather_kernel,
            out_shape=jax.ShapeDtypeStruct((padded_bs, latent_dim),
                                           action_embedding.dtype),
            grid_spec=grid_spec,
            compiler_params=pltpu.CompilerParams(
                dimension_semantics=("parallel",),   # v7x: shard across 2 TCs
                vmem_limit_bytes=int(vmem_limit),
            ),
            cost_estimate=pl.CostEstimate(
                flops=0,
                transcendentals=0,
                bytes_accessed=int(table_bytes + out_bytes + padded_bs * 4),
            ),
        )(idx_padded, action_embedding)
        return out[:bs]

    # ---------------- Large-table fallback: per-row DMA gather ----------------
    # TODO(synk): for very large bs with huge tables, batch B>=8 rows per grid
    # step via manual double-buffered pltpu.make_async_copy from an ANY-space
    # table ref to amortize per-step overhead further.
    grid_spec = pltpu.PrefetchScalarGridSpec(
        num_scalar_prefetch=1,
        grid=(bs,),
        in_specs=[
            pl.BlockSpec(
                (1, latent_dim),
                lambda i, idx_ref: (idx_ref[i], 0),
                pipeline_mode=pl.Buffered(4),        # >2 row fetches in flight
            ),
        ],
        out_specs=pl.BlockSpec((1, latent_dim), lambda i, idx_ref: (i, 0)),
    )
    return pl.pallas_call(
        _row_dma_gather_kernel,
        out_shape=jax.ShapeDtypeStruct((bs, latent_dim), action_embedding.dtype),
        grid_spec=grid_spec,
        compiler_params=pltpu.CompilerParams(
            dimension_semantics=("parallel",),
        ),
        cost_estimate=pl.CostEstimate(
            flops=0,
            transcendentals=0,
            bytes_accessed=int(2 * bs * latent_dim * elem_bytes + bs * 4),
        ),
    )(idx, action_embedding)


# jit the wrapper so the tiny index-extract/cast/pad ops fuse into the same XLA
# computation as the pallas_call (no extra standalone kernels on the hot path).
embed_action = jax.jit(_embed_action_impl)


if __name__ == "__main__":
    key = jax.random.PRNGKey(0)
    k_emb, k_idx = jax.random.split(key)

    num_actions = 16
    latent_dim = 128   # multiple of 128 -> lane-dense output rows
    bs = 8

    # Deterministic parameter init (stand-in for torch.randn(num_actions, latent_dim)).
    action_embedding = jax.random.normal(
        k_emb, (num_actions, latent_dim), dtype=jnp.float32
    )

    # Input is (bs, 1) float whose first column holds action ids, matching
    # input[:, 0].to(torch.long) in the PyTorch module.
    action_ids = jax.random.randint(k_idx, (bs, 1), 0, num_actions)
    inp = action_ids.astype(jnp.float32)

    out = embed_action(inp, action_embedding)
    out = jax.block_until_ready(out)

    # Reference: plain-JAX gather, same semantics as action_embedding[idx].
    ref = action_embedding[inp[:, 0].astype(jnp.int32)]
    assert out.shape == (bs, latent_dim)
    assert out.dtype == jnp.float32
    assert jnp.allclose(out, ref), "Pallas gather does not match reference"

    print("KERNEL_OK")
</pallas_src>

<mosaic_0001>
module attributes {stable_mosaic.version = 11 : i64} {
  func.func @_staged_table_gather_kernel(%arg0: i32, %arg1: memref<8xi32, #tpu.memory_space<smem>>, %arg2: memref<16x128xf32, #tpu.memory_space<vmem>>, %arg3: memref<8x128xf32, #tpu.memory_space<vmem>>) attributes {dimension_semantics = [#tpu.dimension_semantics<parallel>], iteration_bounds = array<i64: 1>, scalar_prefetch = 1 : i64, scratch_operands = 0 : i64, tpu.core_type = #tpu.core_type<tc>, window_params = [{pipeline_mode = #tpu.pipeline_mode<synchronous>, transform_indices = @transform_0, window_bounds = array<i64: 16, 128>}, {transform_indices = @transform_1, window_bounds = array<i64: 8, 128>}]} {
    %c8_i32 = arith.constant 8 : i32
    %0 = arith.muli %arg0, %c8_i32 : i32
    %c0_i32 = arith.constant 0 : i32
    %1 = arith.addi %0, %c0_i32 : i32
    %2 = arith.index_cast %1 : i32 to index
    %3 = memref.load %arg1[%2] : memref<8xi32, #tpu.memory_space<smem>>
    %4 = arith.index_cast %3 : i32 to index
    %c0 = arith.constant 0 : index
    %5 = vector.load %arg2[%4, %c0] : memref<16x128xf32, #tpu.memory_space<vmem>>, vector<1x128xf32>
    %6 = vector.shape_cast %5 : vector<1x128xf32> to vector<128xf32>
    %7 = arith.index_cast %c0_i32 : i32 to index
    %c0_0 = arith.constant 0 : index
    %8 = vector.load %arg3[%7, %c0_0] : memref<8x128xf32, #tpu.memory_space<vmem>>, vector<1x128xf32>
    %9 = vector.shape_cast %8 : vector<1x128xf32> to vector<128xf32>
    %10 = vector.shape_cast %6 : vector<128xf32> to vector<1x128xf32>
    tpu.vector_store %arg3[%7, %c0_0], %10 {strides = array<i32>} : memref<8x128xf32, #tpu.memory_space<vmem>>, vector<1x128xf32>,
    %c1_i32 = arith.constant 1 : i32
    %11 = arith.addi %0, %c1_i32 : i32
    %12 = arith.index_cast %11 : i32 to index
    %13 = memref.load %arg1[%12] : memref<8xi32, #tpu.memory_space<smem>>
    %14 = arith.index_cast %13 : i32 to index
    %c0_1 = arith.constant 0 : index
    %15 = vector.load %arg2[%14, %c0_1] : memref<16x128xf32, #tpu.memory_space<vmem>>, vector<1x128xf32>
    %16 = vector.shape_cast %15 : vector<1x128xf32> to vector<128xf32>
    %17 = arith.index_cast %c1_i32 : i32 to index
    %c0_2 = arith.constant 0 : index
    %18 = vector.load %arg3[%17, %c0_2] : memref<8x128xf32, #tpu.memory_space<vmem>>, vector<1x128xf32>
    %19 = vector.shape_cast %18 : vector<1x128xf32> to vector<128xf32>
    %20 = vector.shape_cast %16 : vector<128xf32> to vector<1x128xf32>
    tpu.vector_store %arg3[%17, %c0_2], %20 {strides = array<i32>} : memref<8x128xf32, #tpu.memory_space<vmem>>, vector<1x128xf32>,
    %c2_i32 = arith.constant 2 : i32
    %21 = arith.addi %0, %c2_i32 : i32
    %22 = arith.index_cast %21 : i32 to index
    %23 = memref.load %arg1[%22] : memref<8xi32, #tpu.memory_space<smem>>
    %24 = arith.index_cast %23 : i32 to index
    %c0_3 = arith.constant 0 : index
    %25 = vector.load %arg2[%24, %c0_3] : memref<16x128xf32, #tpu.memory_space<vmem>>, vector<1x128xf32>
    %26 = vector.shape_cast %25 : vector<1x128xf32> to vector<128xf32>
    %27 = arith.index_cast %c2_i32 : i32 to index
    %c0_4 = arith.constant 0 : index
    %28 = vector.load %arg3[%27, %c0_4] : memref<8x128xf32, #tpu.memory_space<vmem>>, vector<1x128xf32>
    %29 = vector.shape_cast %28 : vector<1x128xf32> to vector<128xf32>
    %30 = vector.shape_cast %26 : vector<128xf32> to vector<1x128xf32>
    tpu.vector_store %arg3[%27, %c0_4], %30 {strides = array<i32>} : memref<8x128xf32, #tpu.memory_space<vmem>>, vector<1x128xf32>,
    %c3_i32 = arith.constant 3 : i32
    %31 = arith.addi %0, %c3_i32 : i32
    %32 = arith.index_cast %31 : i32 to index
    %33 = memref.load %arg1[%32] : memref<8xi32, #tpu.memory_space<smem>>
    %34 = arith.index_cast %33 : i32 to index
    %c0_5 = arith.constant 0 : index
    %35 = vector.load %arg2[%34, %c0_5] : memref<16x128xf32, #tpu.memory_space<vmem>>, vector<1x128xf32>
    %36 = vector.shape_cast %35 : vector<1x128xf32> to vector<128xf32>
    %37 = arith.index_cast %c3_i32 : i32 to index
    %c0_6 = arith.constant 0 : index
    %38 = vector.load %arg3[%37, %c0_6] : memref<8x128xf32, #tpu.memory_space<vmem>>, vector<1x128xf32>
    %39 = vector.shape_cast %38 : vector<1x128xf32> to vector<128xf32>
    %40 = vector.shape_cast %36 : vector<128xf32> to vector<1x128xf32>
    tpu.vector_store %arg3[%37, %c0_6], %40 {strides = array<i32>} : memref<8x128xf32, #tpu.memory_space<vmem>>, vector<1x128xf32>,
    %c4_i32 = arith.constant 4 : i32
    %41 = arith.addi %0, %c4_i32 : i32
    %42 = arith.index_cast %41 : i32 to index
    %43 = memref.load %arg1[%42] : memref<8xi32, #tpu.memory_space<smem>>
    %44 = arith.index_cast %43 : i32 to index
    %c0_7 = arith.constant 0 : index
    %45 = vector.load %arg2[%44, %c0_7] : memref<16x128xf32, #tpu.memory_space<vmem>>, vector<1x128xf32>
    %46 = vector.shape_cast %45 : vector<1x128xf32> to vector<128xf32>
    %47 = arith.index_cast %c4_i32 : i32 to index
    %c0_8 = arith.constant 0 : index
    %48 = vector.load %arg3[%47, %c0_8] : memref<8x128xf32, #tpu.memory_space<vmem>>, vector<1x128xf32>
    %49 = vector.shape_cast %48 : vector<1x128xf32> to vector<128xf32>
    %50 = vector.shape_cast %46 : vector<128xf32> to vector<1x128xf32>
    tpu.vector_store %arg3[%47, %c0_8], %50 {strides = array<i32>} : memref<8x128xf32, #tpu.memory_space<vmem>>, vector<1x128xf32>,
    %c5_i32 = arith.constant 5 : i32
    %51 = arith.addi %0, %c5_i32 : i32
    %52 = arith.index_cast %51 : i32 to index
    %53 = memref.load %arg1[%52] : memref<8xi32, #tpu.memory_space<smem>>
    %54 = arith.index_cast %53 : i32 to index
    %c0_9 = arith.constant 0 : index
    %55 = vector.load %arg2[%54, %c0_9] : memref<16x128xf32, #tpu.memory_space<vmem>>, vector<1x128xf32>
    %56 = vector.shape_cast %55 : vector<1x128xf32> to vector<128xf32>
    %57 = arith.index_cast %c5_i32 : i32 to index
    %c0_10 = arith.constant 0 : index
    %58 = vector.load %arg3[%57, %c0_10] : memref<8x128xf32, #tpu.memory_space<vmem>>, vector<1x128xf32>
    %59 = vector.shape_cast %58 : vector<1x128xf32> to vector<128xf32>
    %60 = vector.shape_cast %56 : vector<128xf32> to vector<1x128xf32>
    tpu.vector_store %arg3[%57, %c0_10], %60 {strides = array<i32>} : memref<8x128xf32, #tpu.memory_space<vmem>>, vector<1x128xf32>,
    %c6_i32 = arith.constant 6 : i32
    %61 = arith.addi %0, %c6_i32 : i32
    %62 = arith.index_cast %61 : i32 to index
    %63 = memref.load %arg1[%62] : memref<8xi32, #tpu.memory_space<smem>>
    %64 = arith.index_cast %63 : i32 to index
    %c0_11 = arith.constant 0 : index
    %65 = vector.load %arg2[%64, %c0_11] : memref<16x128xf32, #tpu.memory_space<vmem>>, vector<1x128xf32>
    %66 = vector.shape_cast %65 : vector<1x128xf32> to vector<128xf32>
    %67 = arith.index_cast %c6_i32 : i32 to index
    %c0_12 = arith.constant 0 : index
    %68 = vector.load %arg3[%67, %c0_12] : memref<8x128xf32, #tpu.memory_space<vmem>>, vector<1x128xf32>
    %69 = vector.shape_cast %68 : vector<1x128xf32> to vector<128xf32>
    %70 = vector.shape_cast %66 : vector<128xf32> to vector<1x128xf32>
    tpu.vector_store %arg3[%67, %c0_12], %70 {strides = array<i32>} : memref<8x128xf32, #tpu.memory_space<vmem>>, vector<1x128xf32>,
    %c7_i32 = arith.constant 7 : i32
    %71 = arith.addi %0, %c7_i32 : i32
    %72 = arith.index_cast %71 : i32 to index
    %73 = memref.load %arg1[%72] : memref<8xi32, #tpu.memory_space<smem>>
    %74 = arith.index_cast %73 : i32 to index
    %c0_13 = arith.constant 0 : index
    %75 = vector.load %arg2[%74, %c0_13] : memref<16x128xf32, #tpu.memory_space<vmem>>, vector<1x128xf32>
    %76 = vector.shape_cast %75 : vector<1x128xf32> to vector<128xf32>
    %77 = arith.index_cast %c7_i32 : i32 to index
    %c0_14 = arith.constant 0 : index
    %78 = vector.load %arg3[%77, %c0_14] : memref<8x128xf32, #tpu.memory_space<vmem>>, vector<1x128xf32>
    %79 = vector.shape_cast %78 : vector<1x128xf32> to vector<128xf32>
    %80 = vector.shape_cast %76 : vector<128xf32> to vector<1x128xf32>
    tpu.vector_store %arg3[%77, %c0_14], %80 {strides = array<i32>} : memref<8x128xf32, #tpu.memory_space<vmem>>, vector<1x128xf32>,
    %c8_i32_15 = arith.constant 8 : i32
    return
  }
  func.func @transform_0(%arg0: i32, %arg1: memref<8xi32, #tpu.memory_space<smem>>) -> (i32, i32) {
    %c0_i32 = arith.constant 0 : i32
    %c0_i32_0 = arith.constant 0 : i32
    %c0_i32_1 = arith.constant 0 : i32
    return %c0_i32, %c0_i32_0 : i32, i32
  }
  func.func @transform_1(%arg0: i32, %arg1: memref<8xi32, #tpu.memory_space<smem>>) -> (i32, i32) {
    %c0_i32 = arith.constant 0 : i32
    %c0_i32_0 = arith.constant 0 : i32
    return %arg0, %c0_i32 : i32, i32
  }
}

</mosaic_0001>

<llo_original>
// kernel: _embed_action_impl.1
$region0: #{_embed_action_impl.1}
  #allocation0 [shape = 'u32[]', space=smem, size = 0x4, offset = 0x4, fixed_abs, tag = 'smem constant byte address 0x4 - core index']
  #allocation1 [shape = 'u32[144,128]{1,0:T(1,128)}', space=vmem, size = 0x12000, scoped, tag = 'internal scratch']
  #allocation2 [shape = 's32[1]{0}', space=sflag, size = 0x4, scoped, tag = 'scoped memory for _embed_action_impl.1']
  #allocation3 [shape = 'u8[512]{0}', space=smem, size = 0x200, scoped, tag = 'prefetched SMEM operand 0']
  %s0 = inlined_call_operand.vmem [shape: s32[8], index: 0, kind: input, shape index: {}]
  %s1 = inlined_call_operand.hbm [shape: f32[16,128], index: 1, kind: input, shape index: {}]
  %s2 = inlined_call_operand.hbm [shape: f32[8,128], index: 2, kind: output, shape index: {}]
  %s3 = sld [smem:[#allocation0]]
  $region18: #{_embed_action_impl.1} parent=0
    _
  %s5 = ssub.s32 1, %s3
  %s6 = scalar_select 0, %s5, %s3
  %s7 = sshll.u32 %s0, 4
  %s8 = int_to_ptr.vmem [resolvable:$true] %s7
  %10 = dma.vmem_to_smem %s8, 16, [#allocation3], [#allocation2]
  %11 = dma.done [#allocation2], 16
  %12 = sfence
  $region1: #{_embed_action_impl.1} parent=0
    #allocation4 [shape = 'u8[8192]{0}', space=vmem, size = 0x2000, scoped, tag = 'input window, operand 1, single buffered']
    #allocation5 [shape = 's32[1]{0}', space=sflag, size = 0x4, scoped, tag = 'scoped memory for _embed_action_impl.1']
    #allocation6 [shape = 's32[1]{0}', space=sflag, size = 0x4, scoped, tag = 'scoped memory for _embed_action_impl.1']
    #allocation7 [shape = 'u8[4096]{0}', space=vmem, size = 0x1000, scoped, tag = 'output window, operand 0, single buffered']
    %13 = vsyncpa [#allocation5], 0
    %14 = vsyncpa [#allocation6], 0
    // Predicated region
    $region2: #{_embed_action_impl.1} parent=1 // pred_check
      _
    $region3: #{_embed_action_impl.1} parent=1 // pred_check_branch
      %16 = sbr.rel (0) target = $region5
    $region4: #{_embed_action_impl.1} parent=1 // pred_region
      %s18 = ssub.s32 256, 256
      %19 = vsyncadd [#allocation5], %s18
      %s20 = sshll.u32 [#allocation4], 4
      %s21 = int_to_ptr.vmem [resolvable:$true] %s20
      %26 = dma.hbm_to_vmem [thread:$0]  %s1, 256, %s21, [#allocation5], 128, 128, 8
    $region5: #{_embed_action_impl.1} parent=1 // pred_fallthru
      _
    // Predicated region
    $region6: #{_embed_action_impl.1} parent=1 // pred_check
      _
    $region7: #{_embed_action_impl.1} parent=1 // pred_check_branch
      %28 = sbr.rel (0) target = $region9
    $region8: #{_embed_action_impl.1} parent=1 // pred_region
      %29 = dma.done [#allocation5], 256
    $region9: #{_embed_action_impl.1} parent=1 // pred_fallthru
      _
    %s30 = smul.u32 0, 8
    %s31 = sld [smem:[#allocation3 + %s30]]
    %s32 = scalar_lea.vmem [#allocation4], %s31
    %v33 = vld [vmem:[%s32] sm:$0x1]
    %34 = vst [vmem:[#allocation7] sm:$0x1] %v33
    %s35 = sadd.s32 %s30, 1
    %s36 = sld [smem:[#allocation3 + %s35]]
    %s37 = scalar_lea.vmem [#allocation4], %s36
    %v38 = vld [vmem:[%s37] sm:$0x1]
    %39 = vst [vmem:[#allocation7 + $0x1] sm:$0x1] %v38
    %s40 = sadd.s32 %s30, 2
    %s41 = sld [smem:[#allocation3 + %s40]]
    %s42 = scalar_lea.vmem [#allocation4], %s41
    %v43 = vld [vmem:[%s42] sm:$0x1]
    %44 = vst [vmem:[#allocation7 + $0x2] sm:$0x1] %v43
    %s45 = sadd.s32 %s30, 3
    %s46 = sld [smem:[#allocation3 + %s45]]
    %s47 = scalar_lea.vmem [#allocation4], %s46
    %v48 = vld [vmem:[%s47] sm:$0x1]
    %49 = vst [vmem:[#allocation7 + $0x3] sm:$0x1] %v48
    %s50 = sadd.s32 %s30, 4
    %s51 = sld [smem:[#allocation3 + %s50]]
    %s52 = scalar_lea.vmem [#allocation4], %s51
    %v53 = vld [vmem:[%s52] sm:$0x1]
    %54 = vst [vmem:[#allocation7 + $0x4] sm:$0x1] %v53
    %s55 = sadd.s32 %s30, 5
    %s56 = sld [smem:[#allocation3 + %s55]]
    %s57 = scalar_lea.vmem [#allocation4], %s56
    %v58 = vld [vmem:[%s57] sm:$0x1]
    %59 = vst [vmem:[#allocation7 + $0x5] sm:$0x1] %v58
    %s60 = sadd.s32 %s30, 6
    %s61 = sld [smem:[#allocation3 + %s60]]
    %s62 = scalar_lea.vmem [#allocation4], %s61
    %v63 = vld [vmem:[%s62] sm:$0x1]
    %64 = vst [vmem:[#allocation7 + $0x6] sm:$0x1] %v63
    %s65 = sadd.s32 %s30, 7
    %s66 = sld [smem:[#allocation3 + %s65]]
    %s67 = scalar_lea.vmem [#allocation4], %s66
    %v68 = vld [vmem:[%s67] sm:$0x1]
    %69 = vst [vmem:[#allocation7 + $0x7] sm:$0x1] %v68
    // Predicated region
    $region10: #{_embed_action_impl.1} parent=1 // pred_check
      _
    $region11: #{_embed_action_impl.1} parent=1 // pred_check_branch
      %71 = sbr.rel (0) target = $region13
    $region12: #{_embed_action_impl.1} parent=1 // pred_region
      %s73 = ssub.s32 128, 128
      %74 = vsyncadd [#allocation6], %s73
      %s76 = sshll.u32 [#allocation7], 4
      %s77 = int_to_ptr.vmem [resolvable:$true] %s76
      %79 = dma.vmem_to_hbm [thread:$0]  %s77, 128, %s2, [#allocation6]
    $region13: #{_embed_action_impl.1} parent=1 // pred_fallthru
      _
    // Predicated region
    $region14: #{_embed_action_impl.1} parent=1 // pred_check
      _
    $region15: #{_embed_action_impl.1} parent=1 // pred_check_branch
      %81 = sbr.rel (0) target = $region17
    $region16: #{_embed_action_impl.1} parent=1 // pred_region
      %82 = dma.done [#allocation6], 128
    $region17: #{_embed_action_impl.1} parent=1 // pred_fallthru
      _
    %83 = vsyncpa [#allocation5], 1
    %84 = vsyncpa [#allocation6], 1

</llo_original>
